<compile_context>
chip_gen: v5e
topology: v5e:2x2
jax: 0.10.0
libtpu: 0.0.40
codegen_flags: <defaults>
</compile_context>

<pallas_src>
import jax
import jax.numpy as jnp
from jax.experimental import pallas as pl
from jax.experimental.pallas import tpu as pltpu


def dqn_kernel(x_ref, w1_ref, b1_ref, wa_ref, ba_ref, wo_ref, bo_ref,
               qa_ref, qo_ref):
    # Cast the batch tile to the weights' dtype (bf16) on the VPU -- free filler
    # under the input DMA -- then run the encoder matmul on the MXU with f32 acc.
    x = x_ref[...].astype(w1_ref.dtype)
    h = jnp.dot(x, w1_ref[...], preferred_element_type=jnp.float32)
    h = jnp.maximum(h + b1_ref[...], 0.0)        # b1 is (1, H), broadcasts over batch
    h = h.astype(wa_ref.dtype)
    # Two tiny head matmuls (each a single MXU pass); outputs stored at their
    # true widths -> minimal HBM writeback, no wrapper split needed.
    qa_ref[...] = jnp.dot(h, wa_ref[...], preferred_element_type=jnp.float32) + ba_ref[...]
    qo_ref[...] = jnp.dot(h, wo_ref[...], preferred_element_type=jnp.float32) + bo_ref[...]


def _round_up(n, m):
    return ((n + m - 1) // m) * m


def _choose_batch_tiling(batch, tile_b):
    """Pick (TILE_B, B_pad, num_tiles): TILE_B multiple of 8, minimal over-pad,
    and >= 2 tiles whenever possible so v7x's two TensorCores both engage."""
    tile_b = max(8, _round_up(int(tile_b), 8))
    b8 = _round_up(batch, 8)
    num_tiles = max(1, -(-b8 // tile_b))
    if b8 >= 16:
        num_tiles = max(num_tiles, 2)
    tile = _round_up(-(-b8 // num_tiles), 8)
    return tile, num_tiles * tile, num_tiles


def prepare_dqn_params(w1, b1, wa, ba, wo, bo, *, param_dtype=jnp.bfloat16):
    """One-time parameter prep (hoisted out of the per-call path).
    Weights are [in, out] (pre-transposed vs. torch); biases become (1, out) f32."""
    as_bias = lambda b: jnp.asarray(b, jnp.float32).reshape(1, -1)
    return {
        "w1": jnp.asarray(w1, param_dtype),
        "b1": as_bias(b1),
        "wa": jnp.asarray(wa, param_dtype),
        "ba": as_bias(ba),
        "wo": jnp.asarray(wo, param_dtype),
        "bo": as_bias(bo),
    }


def dqn_forward(params, x, *, tile_b=512):
    """x: [B, state_dim] float32 (or bf16). Returns (q_action [B, A], q_object [B, O])."""
    B, state_dim = x.shape
    w1, b1 = params["w1"], params["b1"]
    wa, ba = params["wa"], params["ba"]
    wo, bo = params["wo"], params["bo"]
    hidden = w1.shape[1]
    action_dim = wa.shape[1]
    object_dim = wo.shape[1]

    tile_rows, b_pad, num_tiles = _choose_batch_tiling(B, tile_b)

    # Pad only the batch (sublane) dim, and only when needed.
    x_in = x if b_pad == B else jnp.pad(x, ((0, b_pad - B), (0, 0)))

    nbytes = lambda a: a.size * a.dtype.itemsize
    cost = pl.CostEstimate(
        flops=2 * b_pad * (state_dim * hidden + hidden * (action_dim + object_dim)),
        transcendentals=0,
        bytes_accessed=(nbytes(x_in) + nbytes(w1) + nbytes(b1) + nbytes(wa)
                        + nbytes(ba) + nbytes(wo) + nbytes(bo)
                        + b_pad * (action_dim + object_dim) * 4),
    )

    qa, qo = pl.pallas_call(
        dqn_kernel,
        out_shape=(
            jax.ShapeDtypeStruct((b_pad, action_dim), jnp.float32),
            jax.ShapeDtypeStruct((b_pad, object_dim), jnp.float32),
        ),
        grid=(num_tiles,),
        in_specs=[
            # Batch-tiled input; last dim == full array dim, so no feature pad needed.
            pl.BlockSpec((tile_rows, state_dim), lambda i: (i, 0)),
            # Weights / biases: full-array blocks, VMEM-resident across batch tiles.
            pl.BlockSpec((state_dim, hidden), lambda i: (0, 0)),
            pl.BlockSpec((1, hidden), lambda i: (0, 0)),
            pl.BlockSpec((hidden, action_dim), lambda i: (0, 0)),
            pl.BlockSpec((1, action_dim), lambda i: (0, 0)),
            pl.BlockSpec((hidden, object_dim), lambda i: (0, 0)),
            pl.BlockSpec((1, object_dim), lambda i: (0, 0)),
        ],
        out_specs=(
            pl.BlockSpec((tile_rows, action_dim), lambda i: (i, 0)),
            pl.BlockSpec((tile_rows, object_dim), lambda i: (i, 0)),
        ),
        compiler_params=pltpu.CompilerParams(dimension_semantics=("parallel",)),
        cost_estimate=cost,
    )(x_in, w1, b1, wa, ba, wo, bo)

    if b_pad != B:
        qa = qa[:B]
        qo = qo[:B]
    return qa, qo


def init_linear(key, in_features, out_features):
    """Deterministic init mimicking torch.nn.Linear (uniform +-1/sqrt(fan_in)).
    Returns weight pre-transposed as [in_features, out_features] plus bias (1, out)."""
    kw, kb = jax.random.split(key)
    bound = 1.0 / jnp.sqrt(in_features)
    w = jax.random.uniform(kw, (in_features, out_features), jnp.float32, -bound, bound)
    b = jax.random.uniform(kb, (1, out_features), jnp.float32, -bound, bound)
    return w, b


if __name__ == "__main__":
    # Small shapes consistent with the module's forward.
    batch = 2
    state_dim = 16
    hidden_size = 32
    action_dim = 4
    object_dim = 6

    key = jax.random.PRNGKey(0)
    kx, k1, k2, k3 = jax.random.split(key, 4)

    x = jax.random.normal(kx, (batch, state_dim), jnp.float32)
    w1, b1 = init_linear(k1, state_dim, hidden_size)
    wa, ba = init_linear(k2, hidden_size, action_dim)
    wo, bo = init_linear(k3, hidden_size, object_dim)

    # One-time parameter prep (bf16 weights, f32 biases) -- not on the per-call path.
    params = prepare_dqn_params(w1, b1, wa, ba, wo, bo)

    q_action, q_object = dqn_forward(params, x)
    jax.block_until_ready((q_action, q_object))

    # Pure-JAX f32 reference check (tolerance relaxed for bf16 weights, f32 accumulation).
    h_ref = jnp.maximum(x @ w1 + b1, 0.0)
    qa_ref = h_ref @ wa + ba
    qo_ref = h_ref @ wo + bo
    assert q_action.shape == (batch, action_dim)
    assert q_object.shape == (batch, object_dim)
    assert jnp.allclose(q_action, qa_ref, atol=3e-2, rtol=3e-2), "action head mismatch"
    assert jnp.allclose(q_object, qo_ref, atol=3e-2, rtol=3e-2), "object head mismatch"

    print("KERNEL_OK")
</pallas_src>

<mosaic_0001>
module attributes {stable_mosaic.version = 11 : i64} {
  func.func @dqn_kernel(%arg0: i32, %arg1: memref<8x16xf32, #tpu.memory_space<vmem>>, %arg2: memref<16x32xbf16, #tpu.memory_space<vmem>>, %arg3: memref<1x32xf32, #tpu.memory_space<vmem>>, %arg4: memref<32x4xbf16, #tpu.memory_space<vmem>>, %arg5: memref<1x4xf32, #tpu.memory_space<vmem>>, %arg6: memref<32x6xbf16, #tpu.memory_space<vmem>>, %arg7: memref<1x6xf32, #tpu.memory_space<vmem>>, %arg8: memref<8x4xf32, #tpu.memory_space<vmem>>, %arg9: memref<8x6xf32, #tpu.memory_space<vmem>>) attributes {dimension_semantics = [#tpu.dimension_semantics<parallel>], iteration_bounds = array<i64: 1>, scalar_prefetch = 0 : i64, scratch_operands = 0 : i64, tpu.core_type = #tpu.core_type<tc>, window_params = [{transform_indices = @transform_0, window_bounds = array<i64: 8, 16>}, {pipeline_mode = #tpu.pipeline_mode<synchronous>, transform_indices = @transform_1, window_bounds = array<i64: 16, 32>}, {pipeline_mode = #tpu.pipeline_mode<synchronous>, transform_indices = @transform_2, window_bounds = array<i64: 1, 32>}, {pipeline_mode = #tpu.pipeline_mode<synchronous>, transform_indices = @transform_3, window_bounds = array<i64: 32, 4>}, {pipeline_mode = #tpu.pipeline_mode<synchronous>, transform_indices = @transform_4, window_bounds = array<i64: 1, 4>}, {pipeline_mode = #tpu.pipeline_mode<synchronous>, transform_indices = @transform_5, window_bounds = array<i64: 32, 6>}, {pipeline_mode = #tpu.pipeline_mode<synchronous>, transform_indices = @transform_6, window_bounds = array<i64: 1, 6>}, {transform_indices = @transform_7, window_bounds = array<i64: 8, 4>}, {transform_indices = @transform_8, window_bounds = array<i64: 8, 6>}]} {
    %c0 = arith.constant 0 : index
    %c0_0 = arith.constant 0 : index
    %0 = vector.load %arg1[%c0, %c0_0] : memref<8x16xf32, #tpu.memory_space<vmem>>, vector<8x16xf32>
    %1 = arith.truncf %0 : vector<8x16xf32> to vector<8x16xbf16>
    %c0_1 = arith.constant 0 : index
    %c0_2 = arith.constant 0 : index
    %2 = vector.load %arg2[%c0_1, %c0_2] : memref<16x32xbf16, #tpu.memory_space<vmem>>, vector<16x32xbf16>
    %cst = arith.constant dense<0.000000e+00> : vector<8x32xf32>
    %3 = tpu.matmul %1, %2, %cst {dimension_numbers = #tpu.dot_dimension_numbers<[1], [0], [0], [1], [0, 0, 1, 1], [], []>} : vector<8x16xbf16>, vector<16x32xbf16>, vector<8x32xf32> -> vector<8x32xf32>
    %c0_3 = arith.constant 0 : index
    %c0_4 = arith.constant 0 : index
    %4 = vector.load %arg3[%c0_3, %c0_4] : memref<1x32xf32, #tpu.memory_space<vmem>>, vector<1x32xf32>
    %5 = vector.broadcast %4 : vector<1x32xf32> to vector<8x32xf32>
    %6 = arith.addf %3, %5 : vector<8x32xf32>
    %cst_5 = arith.constant 0.000000e+00 : f32
    %7 = vector.broadcast %cst_5 : f32 to vector<8x32xf32>
    %8 = arith.maximumf %6, %7 : vector<8x32xf32>
    %9 = arith.truncf %8 : vector<8x32xf32> to vector<8x32xbf16>
    %c0_6 = arith.constant 0 : index
    %c0_7 = arith.constant 0 : index
    %10 = vector.load %arg4[%c0_6, %c0_7] : memref<32x4xbf16, #tpu.memory_space<vmem>>, vector<32x4xbf16>
    %cst_8 = arith.constant dense<0.000000e+00> : vector<8x4xf32>
    %11 = tpu.matmul %9, %10, %cst_8 {dimension_numbers = #tpu.dot_dimension_numbers<[1], [0], [0], [1], [0, 0, 1, 1], [], []>} : vector<8x32xbf16>, vector<32x4xbf16>, vector<8x4xf32> -> vector<8x4xf32>
    %c0_9 = arith.constant 0 : index
    %c0_10 = arith.constant 0 : index
    %12 = vector.load %arg5[%c0_9, %c0_10] : memref<1x4xf32, #tpu.memory_space<vmem>>, vector<1x4xf32>
    %13 = vector.broadcast %12 : vector<1x4xf32> to vector<8x4xf32>
    %14 = arith.addf %11, %13 : vector<8x4xf32>
    %c0_11 = arith.constant 0 : index
    %c0_12 = arith.constant 0 : index
    %15 = vector.load %arg8[%c0_11, %c0_12] : memref<8x4xf32, #tpu.memory_space<vmem>>, vector<8x4xf32>
    tpu.vector_store %arg8[%c0_11, %c0_12], %14 {strides = array<i32>} : memref<8x4xf32, #tpu.memory_space<vmem>>, vector<8x4xf32>,
    %c0_13 = arith.constant 0 : index
    %c0_14 = arith.constant 0 : index
    %16 = vector.load %arg6[%c0_13, %c0_14] : memref<32x6xbf16, #tpu.memory_space<vmem>>, vector<32x6xbf16>
    %cst_15 = arith.constant dense<0.000000e+00> : vector<8x6xf32>
    %17 = tpu.matmul %9, %16, %cst_15 {dimension_numbers = #tpu.dot_dimension_numbers<[1], [0], [0], [1], [0, 0, 1, 1], [], []>} : vector<8x32xbf16>, vector<32x6xbf16>, vector<8x6xf32> -> vector<8x6xf32>
    %c0_16 = arith.constant 0 : index
    %c0_17 = arith.constant 0 : index
    %18 = vector.load %arg7[%c0_16, %c0_17] : memref<1x6xf32, #tpu.memory_space<vmem>>, vector<1x6xf32>
    %19 = vector.broadcast %18 : vector<1x6xf32> to vector<8x6xf32>
    %20 = arith.addf %17, %19 : vector<8x6xf32>
    %c0_18 = arith.constant 0 : index
    %c0_19 = arith.constant 0 : index
    %21 = vector.load %arg9[%c0_18, %c0_19] : memref<8x6xf32, #tpu.memory_space<vmem>>, vector<8x6xf32>
    tpu.vector_store %arg9[%c0_18, %c0_19], %20 {strides = array<i32>} : memref<8x6xf32, #tpu.memory_space<vmem>>, vector<8x6xf32>,
    return
  }
  func.func @transform_0(%arg0: i32) -> (i32, i32) {
    %c0_i32 = arith.constant 0 : i32
    %c0_i32_0 = arith.constant 0 : i32
    return %arg0, %c0_i32 : i32, i32
  }
  func.func @transform_1(%arg0: i32) -> (i32, i32) {
    %c0_i32 = arith.constant 0 : i32
    %c0_i32_0 = arith.constant 0 : i32
    %c0_i32_1 = arith.constant 0 : i32
    return %c0_i32, %c0_i32_0 : i32, i32
  }
  func.func @transform_2(%arg0: i32) -> (i32, i32) {
    %c0_i32 = arith.constant 0 : i32
    %c0_i32_0 = arith.constant 0 : i32
    %c0_i32_1 = arith.constant 0 : i32
    return %c0_i32, %c0_i32_0 : i32, i32
  }
  func.func @transform_3(%arg0: i32) -> (i32, i32) {
    %c0_i32 = arith.constant 0 : i32
    %c0_i32_0 = arith.constant 0 : i32
    %c0_i32_1 = arith.constant 0 : i32
    return %c0_i32, %c0_i32_0 : i32, i32
  }
  func.func @transform_4(%arg0: i32) -> (i32, i32) {
    %c0_i32 = arith.constant 0 : i32
    %c0_i32_0 = arith.constant 0 : i32
    %c0_i32_1 = arith.constant 0 : i32
    return %c0_i32, %c0_i32_0 : i32, i32
  }
  func.func @transform_5(%arg0: i32) -> (i32, i32) {
    %c0_i32 = arith.constant 0 : i32
    %c0_i32_0 = arith.constant 0 : i32
    %c0_i32_1 = arith.constant 0 : i32
    return %c0_i32, %c0_i32_0 : i32, i32
  }
  func.func @transform_6(%arg0: i32) -> (i32, i32) {
    %c0_i32 = arith.constant 0 : i32
    %c0_i32_0 = arith.constant 0 : i32
    %c0_i32_1 = arith.constant 0 : i32
    return %c0_i32, %c0_i32_0 : i32, i32
  }
  func.func @transform_7(%arg0: i32) -> (i32, i32) {
    %c0_i32 = arith.constant 0 : i32
    %c0_i32_0 = arith.constant 0 : i32
    return %arg0, %c0_i32 : i32, i32
  }
  func.func @transform_8(%arg0: i32) -> (i32, i32) {
    %c0_i32 = arith.constant 0 : i32
    %c0_i32_0 = arith.constant 0 : i32
    return %arg0, %c0_i32 : i32, i32
  }
}

</mosaic_0001>

<llo_original>
// kernel: tpu_custom_call.1
$region0: #{tpu_custom_call.1}
  #allocation0 [shape = 'u32[]', space=smem, size = 0x4, offset = 0x4, fixed_abs, tag = 'smem constant byte address 0x4 - core index']
  #allocation1 [shape = 'u32[72,128]{1,0:T(1,128)}', space=vmem, size = 0x9000, scoped, tag = 'internal scratch']
  %s0 = inlined_call_operand.vmem [shape: f32[8,16], index: 0, kind: input, shape index: {}]
  %s1 = inlined_call_operand.vmem [shape: bf16[16,32], index: 1, kind: input, shape index: {}]
  %s2 = inlined_call_operand.vmem [shape: f32[1,32], index: 2, kind: input, shape index: {}]
  %s3 = inlined_call_operand.vmem [shape: bf16[32,4], index: 3, kind: input, shape index: {}]
  %s4 = inlined_call_operand.vmem [shape: f32[1,4], index: 4, kind: input, shape index: {}]
  %s5 = inlined_call_operand.vmem [shape: bf16[32,6], index: 5, kind: input, shape index: {}]
  %s6 = inlined_call_operand.vmem [shape: f32[1,6], index: 6, kind: input, shape index: {}]
  %s7 = inlined_call_operand.vmem [shape: f32[8,4], index: 7, kind: output, shape index: {0}]
  %s8 = inlined_call_operand.hbm [shape: f32[8,6], index: 8, kind: output, shape index: {1}]
  %9 = xla_tuple %s7, %s8
  %s10 = sld [smem:[#allocation0]]
  $region46: #{tpu_custom_call.1} parent=0
    _
  %s12 = ssub.s32 1, %s10
  %s13 = scalar_select 0, %s12, %s10
  $region1: #{tpu_custom_call.1} parent=0
    #allocation2 [shape = 'u8[4096]{0}', space=vmem, size = 0x1000, scoped, tag = 'output window, operand 1, single buffered']
    #allocation3 [shape = 's32[1]{0}', space=sflag, size = 0x4, scoped, tag = 'scoped memory for tpu_custom_call.1']
    %14 = vsyncpa [#allocation3], 0
    // Predicated region
    $region2: #{tpu_custom_call.1} parent=1 // pred_check
      _
    $region3: #{tpu_custom_call.1} parent=1 // pred_check_branch
      %16 = sbr.rel (0) target = $region5
    $region4: #{tpu_custom_call.1} parent=1 // pred_region
      _
    $region5: #{tpu_custom_call.1} parent=1 // pred_fallthru
      _
    // Predicated region
    $region6: #{tpu_custom_call.1} parent=1 // pred_check
      _
    $region7: #{tpu_custom_call.1} parent=1 // pred_check_branch
      %18 = sbr.rel (0) target = $region9
    $region8: #{tpu_custom_call.1} parent=1 // pred_region
      _
    $region9: #{tpu_custom_call.1} parent=1 // pred_fallthru
      _
    // Predicated region
    $region10: #{tpu_custom_call.1} parent=1 // pred_check
      _
    $region11: #{tpu_custom_call.1} parent=1 // pred_check_branch
      %20 = sbr.rel (0) target = $region13
    $region12: #{tpu_custom_call.1} parent=1 // pred_region
      _
    $region13: #{tpu_custom_call.1} parent=1 // pred_fallthru
      _
    // Predicated region
    $region14: #{tpu_custom_call.1} parent=1 // pred_check
      _
    $region15: #{tpu_custom_call.1} parent=1 // pred_check_branch
      %22 = sbr.rel (0) target = $region17
    $region16: #{tpu_custom_call.1} parent=1 // pred_region
      _
    $region17: #{tpu_custom_call.1} parent=1 // pred_fallthru
      _
    // Predicated region
    $region18: #{tpu_custom_call.1} parent=1 // pred_check
      _
    $region19: #{tpu_custom_call.1} parent=1 // pred_check_branch
      %24 = sbr.rel (0) target = $region21
    $region20: #{tpu_custom_call.1} parent=1 // pred_region
      _
    $region21: #{tpu_custom_call.1} parent=1 // pred_fallthru
      _
    // Predicated region
    $region22: #{tpu_custom_call.1} parent=1 // pred_check
      _
    $region23: #{tpu_custom_call.1} parent=1 // pred_check_branch
      %26 = sbr.rel (0) target = $region25
    $region24: #{tpu_custom_call.1} parent=1 // pred_region
      _
    $region25: #{tpu_custom_call.1} parent=1 // pred_fallthru
      _
    // Predicated region
    $region26: #{tpu_custom_call.1} parent=1 // pred_check
      _
    $region27: #{tpu_custom_call.1} parent=1 // pred_check_branch
      %28 = sbr.rel (0) target = $region29
    $region28: #{tpu_custom_call.1} parent=1 // pred_region
      _
    $region29: #{tpu_custom_call.1} parent=1 // pred_fallthru
      _
    %v30 = vld [vmem:[%s0] sm:$0xff]
    %v31 = vpack.c.bf16 %v30, %v30
    %v32 = vld [vmem:[%s1] sm:$0xf]
    %v33 = vld [vmem:[%s1 + $0x4] sm:$0xf]
    %v34 = vld [vmem:[%s2] sm:$0x1]
    %v36 = vperm.slane %v34, 0
    %v40 = vunpack.c.l.b16 %v32
    %v41 = vunpack.c.l.b16 %v33
    %v42 = vpack.c.b16 %v41, %v40
    %vm44 = vcmask 130048
    %v46 = vsel %vm44, %v31, 0
    %48 = vmatpush.bf16.msra.mxu0 0
    %49 = vmatpush.bf16.msra.mxu0 0
    %50 = vmatpush.bf16.msra.mxu0 0
    %51 = vmatpush.bf16.msra.mxu0 0
    %52 = vmatpush.bf16.msra.mxu0 0
    %53 = vmatpush.bf16.msra.mxu0 0
    %54 = vmatpush.bf16.msra.mxu0 0
    %55 = vmatpush.bf16.msra.mxu0 %v42
    %56 = vmatmul.bf16.gmra.mxu0 %v46
    %v57 = vpop.f32.mrf.mxu0
    %v58 = vadd.f32 %v36, %v57
    %v59 = vpop.f32.mrf.mxu0
    %60 = vdwg.mxu0
    %v61 = vmax.f32 %v58, 0.0
    %v62 = vpack.c.bf16 %v61, %v61
    %v63 = vld [vmem:[%s3] sm:$0xf]
    %v64 = vld [vmem:[%s3 + $0x4] sm:$0xf]
    %v65 = vld [vmem:[%s3 + $0x8] sm:$0xf]
    %v66 = vld [vmem:[%s3 + $0xc] sm:$0xf]
    %v67 = vld [vmem:[%s4] sm:$0x1]
    %v69 = vperm.slane %v67, 0
    %v75 = vunpack.c.l.b16 %v63
    %v76 = vunpack.c.l.b16 %v64
    %v77 = vunpack.c.l.b16 %v65
    %v78 = vunpack.c.l.b16 %v66
    %v79 = vpack.c.b16 %v76, %v75
    %v80 = vpack.c.b16 %v78, %v77
    %vm83 = vcmask 261120
    %v85 = vsel %vm83, %v62, 0
    %87 = vmatpush.bf16.msra.mxu0 0
    %88 = vmatpush.bf16.msra.mxu0 0
    %89 = vmatpush.bf16.msra.mxu0 0
    %90 = vmatpush.bf16.msra.mxu0 0
    %91 = vmatpush.bf16.msra.mxu0 0
    %92 = vmatpush.bf16.msra.mxu0 0
    %93 = vmatpush.bf16.msra.mxu0 %v80
    %94 = vmatpush.bf16.msra.mxu0 %v79
    %95 = vmatmul.bf16.gmra.mxu0 %v85
    %v96 = vpop.f32.mrf.mxu0
    %v97 = vadd.f32 %v69, %v96
    %v98 = vpop.f32.mrf.mxu0
    %99 = vdwg.mxu0
    %vm100 = vcmask 31744
    %101 = vst.msk [vmem:[%s7] sm:$0xff] %vm100, %v97
    %v102 = vld [vmem:[%s5] sm:$0xf]
    %v103 = vld [vmem:[%s5 + $0x4] sm:$0xf]
    %v104 = vld [vmem:[%s5 + $0x8] sm:$0xf]
    %v105 = vld [vmem:[%s5 + $0xc] sm:$0xf]
    %v106 = vld [vmem:[%s6] sm:$0x1]
    %v108 = vperm.slane %v106, 0
    %v114 = vunpack.c.l.b16 %v102
    %v115 = vunpack.c.l.b16 %v103
    %v116 = vunpack.c.l.b16 %v104
    %v117 = vunpack.c.l.b16 %v105
    %v118 = vpack.c.b16 %v115, %v114
    %v119 = vpack.c.b16 %v117, %v116
    %122 = vmatpush.bf16.msra.mxu0 0
    %123 = vmatpush.bf16.msra.mxu0 0
    %124 = vmatpush.bf16.msra.mxu0 0
    %125 = vmatpush.bf16.msra.mxu0 0
    %126 = vmatpush.bf16.msra.mxu0 0
    %127 = vmatpush.bf16.msra.mxu0 0
    %128 = vmatpush.bf16.msra.mxu0 %v119
    %129 = vmatpush.bf16.msra.mxu0 %v118
    %130 = vmatmul.bf16.gmra.mxu0 %v85
    %v131 = vpop.f32.mrf.mxu0
    %v132 = vadd.f32 %v108, %v131
    %v133 = vpop.f32.mrf.mxu0
    %134 = vdwg.mxu0
    %vm135 = vcmask 48128
    %136 = vst.msk [vmem:[#allocation2] sm:$0xff] %vm135, %v132
    // Predicated region
    $region30: #{tpu_custom_call.1} parent=1 // pred_check
      _
    $region31: #{tpu_custom_call.1} parent=1 // pred_check_branch
      %138 = sbr.rel (0) target = $region33
    $region32: #{tpu_custom_call.1} parent=1 // pred_region
      _
    $region33: #{tpu_custom_call.1} parent=1 // pred_fallthru
      _
    // Predicated region
    $region34: #{tpu_custom_call.1} parent=1 // pred_check
      _
    $region35: #{tpu_custom_call.1} parent=1 // pred_check_branch
      %140 = sbr.rel (0) target = $region37
    $region36: #{tpu_custom_call.1} parent=1 // pred_region
      %142 = vsyncadd [#allocation3], 0
      %s144 = sshll.u32 [#allocation2], 4
      %s145 = int_to_ptr.vmem [resolvable:$true] %s144
      %s146 = sshll.u32 %s8, 4
      %s147 = int_to_ptr.hbm [resolvable:$true] %s146
      %149 = dma.vmem_to_hbm [thread:$0]  %s145, 128, %s147, [#allocation3]
    $region37: #{tpu_custom_call.1} parent=1 // pred_fallthru
      _
    // Predicated region
    $region38: #{tpu_custom_call.1} parent=1 // pred_check
      _
    $region39: #{tpu_custom_call.1} parent=1 // pred_check_branch
      %151 = sbr.rel (0) target = $region41
    $region40: #{tpu_custom_call.1} parent=1 // pred_region
      _
    $region41: #{tpu_custom_call.1} parent=1 // pred_fallthru
      _
    // Predicated region
    $region42: #{tpu_custom_call.1} parent=1 // pred_check
      _
    $region43: #{tpu_custom_call.1} parent=1 // pred_check_branch
      %153 = sbr.rel (0) target = $region45
    $region44: #{tpu_custom_call.1} parent=1 // pred_region
      %155 = dma.done [#allocation3], 128
    $region45: #{tpu_custom_call.1} parent=1 // pred_fallthru
      _
    %156 = vsyncpa [#allocation3], 1

</llo_original>
